<compile_context>
chip_gen: v7x
topology: tpu7x:2x2x1
jax: 0.10.0
libtpu: 0.0.40
codegen_flags: <defaults>
</compile_context>

<pallas_src>
import jax
import jax.numpy as jnp
import numpy as np
from jax.experimental import pallas as pl
from jax.experimental.pallas import tpu as pltpu


def _round_up(n, m):
    return ((n + m - 1) // m) * m


def _pick_tile(dim, unit, max_tile):
    """Largest multiple of `unit` that divides `dim`, capped at `max_tile`.

    Callers pad `dim` to a multiple of `unit` first, so this always returns a
    clean divisor >= unit (no full-extent fallback).
    """
    cap = max(unit, min(max_tile, dim))
    t = (cap // unit) * unit
    while dim % t != 0:
        t -= unit
    return t


def _make_kernel(C, row_tile):
    def kernel(x_ref, xmu_ref, zmu_ref, zlv_ref,
               l2_ref, l1_ref, kl_ref, acc_ref):
        i = pl.program_id(0)           # row block (parallel)
        j = pl.program_id(1)           # HW column block (reduction axis)
        nj = pl.num_programs(1)

        # (row_tile, 1) channel mask: row r of the (B*C, HW) layout is channel
        # r % C.  Narrow column, broadcast in the select below.
        row = jax.lax.broadcasted_iota(jnp.int32, (row_tile, 1), 0) + i * row_tile
        is_low = (row % C) == 0

        @pl.when(j == 0)
        def _():
            acc_ref[...] = jnp.zeros_like(acc_ref)

        # Inputs stream in native dtype; upcast per tile inside the kernel.
        d = jnp.abs(x_ref[...].astype(jnp.float32) -
                    xmu_ref[...].astype(jnp.float32))
        # |d|^2 == d^2 exactly, so the same abs feeds both branches.
        contrib = jnp.where(is_low, d * d, d)
        # One narrow accumulator RMW per tile; lane reduce goes to the XLU.
        acc_ref[...] += jnp.sum(contrib, axis=-1, keepdims=True)

        # KL over (B, Cz) is tiny: compute it exactly once, at grid step (0,0).
        @pl.when(jnp.logical_and(i == 0, j == 0))
        def _():
            zmu = zmu_ref[...].astype(jnp.float32)
            zlv = zlv_ref[...].astype(jnp.float32)
            kl_ref[0, 0] = -0.5 * jnp.sum(1.0 + zlv - zmu * zmu - jnp.exp(zlv))

        @pl.when(j == nj - 1)
        def _():
            # Split the fused accumulator into l2 / l1 with two masked sums.
            a = acc_ref[...]
            l2_ref[0, 0] = jnp.sum(jnp.where(is_low, a, 0.0))
            l1_ref[0, 0] = jnp.sum(jnp.where(is_low, 0.0, a))

    return kernel


def l2l1_vae_loss(x, x_mu, z_mu, z_logvar, *, stdev=1.0, laplace_b=1.0,
                  kl_weight=1.0, max_row_tile=256, max_col_tile=8192):
    """x, x_mu: (B, C, H, W); z_mu, z_logvar: (B, Cz). Returns scalar loss."""
    B, C, H, W = x.shape
    HW = H * W
    R = B * C

    # Lane-dense 2D layout: row r = (b, c) with c = r % C (contiguous NCHW).
    x2 = x.reshape(R, HW)
    m2 = x_mu.reshape(R, HW)

    itemsize = min(jnp.dtype(x2.dtype).itemsize, jnp.dtype(m2.dtype).itemsize)
    sub_unit = max(8, 32 // max(itemsize, 1))   # 8 for f32, 16 for bf16, 32 for int8
    lane_unit = 128

    # Pad ragged extents with zeros: x and x_mu get identical padding, so the
    # padded elements contribute exactly 0 to every partial sum.
    R_pad = _round_up(R, sub_unit)
    HW_pad = _round_up(HW, lane_unit)
    if (R_pad, HW_pad) != (R, HW):
        pad = ((0, R_pad - R), (0, HW_pad - HW))
        x2 = jnp.pad(x2, pad)
        m2 = jnp.pad(m2, pad)

    # Prefer >=2 row blocks so the "parallel" row axis can shard across the
    # two v7x TensorCores (single-TC v5e/v6e just see more, slightly smaller
    # blocks, compensated by the larger column tile).
    row_cap = max_row_tile
    if R_pad >= 2 * sub_unit:
        half = (R_pad // 2) // sub_unit * sub_unit
        row_cap = min(max_row_tile, max(sub_unit, half))
    row_tile = _pick_tile(R_pad, sub_unit, row_cap)
    col_tile = _pick_tile(HW_pad, lane_unit, max_col_tile)
    n_row = R_pad // row_tile
    n_col = HW_pad // col_tile

    # Double-buffered input streams + headroom; clamp so it also fits under
    # v7x's 64 MiB physical VMEM.
    stream_bytes = 2 * row_tile * col_tile * (
        jnp.dtype(x2.dtype).itemsize + jnp.dtype(m2.dtype).itemsize)
    vmem_limit = int(min(max(32 << 20, stream_bytes + (8 << 20)), 48 << 20))

    kernel = _make_kernel(C, row_tile)

    part = jax.ShapeDtypeStruct((n_row, 1), jnp.float32)
    smem_out = pl.BlockSpec((1, 1), lambda i, j: (i, 0),
                            memory_space=pltpu.MemorySpace.SMEM)

    grid_spec = pltpu.PrefetchScalarGridSpec(
        num_scalar_prefetch=0,
        grid=(n_row, n_col),
        in_specs=[
            pl.BlockSpec((row_tile, col_tile), lambda i, j: (i, j)),
            pl.BlockSpec((row_tile, col_tile), lambda i, j: (i, j)),
            pl.BlockSpec(z_mu.shape, lambda i, j: (0, 0)),      # tiny, resident
            pl.BlockSpec(z_logvar.shape, lambda i, j: (0, 0)),  # tiny, resident
        ],
        out_specs=(smem_out, smem_out, smem_out),
        scratch_shapes=[
            # Single fused (l2|l1) per-row partial-sum accumulator.
            pltpu.VMEM((row_tile, 1), jnp.float32),
        ],
    )

    l2_part, l1_part, kl_part = pl.pallas_call(
        kernel,
        out_shape=(part, part, part),
        grid_spec=grid_spec,
        compiler_params=pltpu.CompilerParams(
            dimension_semantics=("parallel", "arbitrary"),
            vmem_limit_bytes=vmem_limit,
        ),
    )(x2, m2, z_mu, z_logvar)

    l2_mean = jnp.sum(l2_part) / (B * 1 * HW)   # MSE mean over (B, 1, H, W)
    l1_mean = jnp.sum(l1_part) / B              # per-sample L1 sums, batch mean
    kl_mean = kl_part[0, 0] / B                 # per-sample KL, batch mean

    return l2_mean / (stdev ** 2) + l1_mean / laplace_b + kl_weight * kl_mean


def _reference_loss(x, x_mu, z_mu, z_logvar, stdev, laplace_b, kl_weight):
    l2 = jnp.mean((x[:, 0:1] - x_mu[:, 0:1]) ** 2)
    l1 = jnp.mean(jnp.sum(jnp.abs(x[:, 1:] - x_mu[:, 1:]), axis=(1, 2, 3)))
    kl = jnp.mean(-0.5 * jnp.sum(1.0 + z_logvar - z_mu ** 2 - jnp.exp(z_logvar), axis=1))
    return l2 / stdev ** 2 + l1 / laplace_b + kl_weight * kl


if __name__ == "__main__":
    # TODO(synk): loss_logging_listener (host-side .item() logging) has no
    # in-kernel equivalent; the three components are recoverable from the
    # partial-sum outputs if logging is needed.
    def run_case(B, C, H, W, Cz, stdev, laplace_b, kl_weight, **tile_kw):
        key = jax.random.PRNGKey(0)
        k1, k2, k3, k4 = jax.random.split(key, 4)
        x = jax.random.normal(k1, (B, C, H, W), dtype=jnp.float32)
        x_mu = jax.random.normal(k2, (B, C, H, W), dtype=jnp.float32)
        z_mu = jax.random.normal(k3, (B, Cz), dtype=jnp.float32)
        z_logvar = 0.1 * jax.random.normal(k4, (B, Cz), dtype=jnp.float32)

        loss = l2l1_vae_loss(x, x_mu, z_mu, z_logvar, stdev=stdev,
                             laplace_b=laplace_b, kl_weight=kl_weight, **tile_kw)
        loss = jax.block_until_ready(loss)

        ref = _reference_loss(x, x_mu, z_mu, z_logvar, stdev, laplace_b, kl_weight)
        ref = jax.block_until_ready(ref)

        assert np.allclose(np.asarray(loss), np.asarray(ref),
                           rtol=1e-5, atol=1e-5), (loss, ref)

    # Small single-block case (module's documented NCHW shapes).
    run_case(2, 4, 16, 16, 32, 0.5, 2.0, 1.0)
    # Multi-block case: 2 row blocks x 4 column blocks exercises the parallel
    # axis, the accumulator init/finalize path and the per-row-block outputs.
    run_case(4, 4, 32, 32, 32, 1.0, 1.5, 0.7, max_row_tile=8, max_col_tile=256)
    # Ragged case: C=3 and H*W=400 exercise row/column zero-padding and the
    # non-power-of-two channel mask, with multiple column blocks.
    run_case(2, 3, 20, 20, 16, 1.3, 0.8, 0.5, max_col_tile=128)

    print("KERNEL_OK")
</pallas_src>

<mosaic_0001>
module attributes {stable_mosaic.version = 11 : i64} {
  func.func @kernel(%arg0: i32, %arg1: i32, %arg2: memref<8x256xf32, #tpu.memory_space<vmem>>, %arg3: memref<8x256xf32, #tpu.memory_space<vmem>>, %arg4: memref<2x32xf32, #tpu.memory_space<vmem>>, %arg5: memref<2x32xf32, #tpu.memory_space<vmem>>, %arg6: memref<1x1xf32, #tpu.memory_space<smem>>, %arg7: memref<1x1xf32, #tpu.memory_space<smem>>, %arg8: memref<1x1xf32, #tpu.memory_space<smem>>, %arg9: memref<8x1xf32, #tpu.memory_space<vmem>>) attributes {dimension_semantics = [#tpu.dimension_semantics<parallel>, #tpu.dimension_semantics<arbitrary>], iteration_bounds = array<i64: 1, 1>, scalar_prefetch = 0 : i64, scratch_operands = 1 : i64, tpu.core_type = #tpu.core_type<tc>, window_params = [{transform_indices = @transform_0, window_bounds = array<i64: 8, 256>}, {transform_indices = @transform_1, window_bounds = array<i64: 8, 256>}, {pipeline_mode = #tpu.pipeline_mode<synchronous>, transform_indices = @transform_2, window_bounds = array<i64: 2, 32>}, {pipeline_mode = #tpu.pipeline_mode<synchronous>, transform_indices = @transform_3, window_bounds = array<i64: 2, 32>}, {transform_indices = @transform_4, window_bounds = array<i64: 1, 1>}, {transform_indices = @transform_5, window_bounds = array<i64: 1, 1>}, {transform_indices = @transform_6, window_bounds = array<i64: 1, 1>}]} {
    %0 = tpu.iota {dimensions = array<i32: 0>} : vector<8x1xi32>
    %c8_i32 = arith.constant 8 : i32
    %1 = arith.muli %arg0, %c8_i32 : i32
    %2 = vector.broadcast %1 : i32 to vector<8x1xi32>
    %3 = arith.addi %0, %2 : vector<8x1xi32>
    %c4_i32 = arith.constant 4 : i32
    %c0_i32 = arith.constant 0 : i32
    %4 = arith.cmpi eq, %c4_i32, %c0_i32 : i32
    %c1_i32 = arith.constant 1 : i32
    %5 = arith.select %4, %c1_i32, %c4_i32 : i32
    %6 = vector.broadcast %5 : i32 to vector<8x1xi32>
    %7 = arith.remsi %3, %6 : vector<8x1xi32>
    %c0_i32_0 = arith.constant 0 : i32
    %8 = vector.broadcast %c0_i32_0 : i32 to vector<8x1xi32>
    %9 = arith.cmpi ne, %7, %8 : vector<8x1xi32>
    %c0_i32_1 = arith.constant 0 : i32
    %10 = vector.broadcast %c0_i32_1 : i32 to vector<8x1xi32>
    %11 = arith.cmpi slt, %7, %10 : vector<8x1xi32>
    %c0_i32_2 = arith.constant 0 : i32
    %12 = arith.cmpi slt, %5, %c0_i32_2 : i32
    %13 = vector.broadcast %12 : i1 to vector<8x1xi1>
    %14 = vector.broadcast %13 : vector<8x1xi1> to vector<8x1xi1>
    %15 = arith.xori %11, %14 : vector<8x1xi1>
    %16 = arith.andi %15, %9 : vector<8x1xi1>
    %17 = vector.broadcast %5 : i32 to vector<8x1xi32>
    %18 = arith.addi %7, %17 : vector<8x1xi32>
    %19 = arith.select %16, %18, %7 : vector<8x1xi1>, vector<8x1xi32>
    %c0_i32_3 = arith.constant 0 : i32
    %20 = vector.broadcast %c0_i32_3 : i32 to vector<8x1xi32>
    %21 = arith.cmpi eq, %19, %20 : vector<8x1xi32>
    %c0_i32_4 = arith.constant 0 : i32
    %22 = arith.cmpi eq, %arg1, %c0_i32_4 : i32
    %23 = arith.extui %22 : i1 to i32
    %c0_i32_5 = arith.constant 0 : i32
    %24 = arith.cmpi ne, %23, %c0_i32_5 : i32
    scf.if %24 {
      %cst_18 = arith.constant 0.000000e+00 : f32
      %46 = vector.broadcast %cst_18 : f32 to vector<8x1xf32>
      %c0_19 = arith.constant 0 : index
      %c0_20 = arith.constant 0 : index
      %47 = vector.load %arg9[%c0_19, %c0_20] : memref<8x1xf32, #tpu.memory_space<vmem>>, vector<8x1xf32>
      tpu.vector_store %arg9[%c0_19, %c0_20], %46 {strides = array<i32>} : memref<8x1xf32, #tpu.memory_space<vmem>>, vector<8x1xf32>,
    } else {
    }
    %c0 = arith.constant 0 : index
    %c0_6 = arith.constant 0 : index
    %25 = vector.load %arg2[%c0, %c0_6] : memref<8x256xf32, #tpu.memory_space<vmem>>, vector<8x256xf32>
    %c0_7 = arith.constant 0 : index
    %c0_8 = arith.constant 0 : index
    %26 = vector.load %arg3[%c0_7, %c0_8] : memref<8x256xf32, #tpu.memory_space<vmem>>, vector<8x256xf32>
    %27 = arith.subf %25, %26 : vector<8x256xf32>
    %28 = math.absf %27 : vector<8x256xf32>
    %29 = arith.mulf %28, %28 : vector<8x256xf32>
    %30 = vector.shape_cast %21 : vector<8x1xi1> to vector<8x1xi1>
    %31 = vector.broadcast %30 : vector<8x1xi1> to vector<8x256xi1>
    %32 = arith.select %31, %29, %28 : vector<8x256xi1>, vector<8x256xf32>
    %c0_9 = arith.constant 0 : index
    %c0_10 = arith.constant 0 : index
    %33 = vector.load %arg9[%c0_9, %c0_10] : memref<8x1xf32, #tpu.memory_space<vmem>>, vector<8x1xf32>
    %cst = arith.constant dense<0.000000e+00> : vector<8xf32>
    %34 = vector.multi_reduction <add>, %32, %cst [1] : vector<8x256xf32> to vector<8xf32>
    %35 = vector.shape_cast %34 : vector<8xf32> to vector<8x1xf32>
    %36 = arith.addf %33, %35 : vector<8x1xf32>
    %c0_11 = arith.constant 0 : index
    %c0_12 = arith.constant 0 : index
    %37 = vector.load %arg9[%c0_11, %c0_12] : memref<8x1xf32, #tpu.memory_space<vmem>>, vector<8x1xf32>
    tpu.vector_store %arg9[%c0_11, %c0_12], %36 {strides = array<i32>} : memref<8x1xf32, #tpu.memory_space<vmem>>, vector<8x1xf32>,
    %c0_i32_13 = arith.constant 0 : i32
    %38 = arith.cmpi eq, %arg0, %c0_i32_13 : i32
    %c0_i32_14 = arith.constant 0 : i32
    %39 = arith.cmpi eq, %arg1, %c0_i32_14 : i32
    %40 = arith.andi %38, %39 : i1
    %41 = arith.extui %40 : i1 to i32
    %c0_i32_15 = arith.constant 0 : i32
    %42 = arith.cmpi ne, %41, %c0_i32_15 : i32
    scf.if %42 {
      %c0_18 = arith.constant 0 : index
      %c0_19 = arith.constant 0 : index
      %46 = vector.load %arg4[%c0_18, %c0_19] : memref<2x32xf32, #tpu.memory_space<vmem>>, vector<2x32xf32>
      %c0_20 = arith.constant 0 : index
      %c0_21 = arith.constant 0 : index
      %47 = vector.load %arg5[%c0_20, %c0_21] : memref<2x32xf32, #tpu.memory_space<vmem>>, vector<2x32xf32>
      %cst_22 = arith.constant 1.000000e+00 : f32
      %48 = vector.broadcast %cst_22 : f32 to vector<2x32xf32>
      %49 = arith.addf %48, %47 : vector<2x32xf32>
      %50 = arith.mulf %46, %46 : vector<2x32xf32>
      %51 = arith.subf %49, %50 : vector<2x32xf32>
      %52 = math.exp %47 : vector<2x32xf32>
      %53 = arith.subf %51, %52 : vector<2x32xf32>
      %54 = vector.shape_cast %53 : vector<2x32xf32> to vector<1x2x32xf32>
      %cst_23 = arith.constant dense<0.000000e+00> : vector<1xf32>
      %55 = vector.multi_reduction <add>, %54, %cst_23 [1, 2] : vector<1x2x32xf32> to vector<1xf32>
      %56 = vector.shape_cast %55 : vector<1xf32> to vector<1x1x1xf32>
      %57 = vector.extract %56[0, 0, 0] : f32 from vector<1x1x1xf32>
      %cst_24 = arith.constant -5.000000e-01 : f32
      %58 = arith.mulf %cst_24, %57 : f32
      %c0_25 = arith.constant 0 : index
      %c0_26 = arith.constant 0 : index
      %59 = memref.load %arg8[%c0_25, %c0_26] : memref<1x1xf32, #tpu.memory_space<smem>>
      memref.store %58, %arg8[%c0_25, %c0_26] : memref<1x1xf32, #tpu.memory_space<smem>>
    } else {
    }
    %c0_i32_16 = arith.constant 0 : i32
    %43 = arith.cmpi eq, %arg1, %c0_i32_16 : i32
    %44 = arith.extui %43 : i1 to i32
    %c0_i32_17 = arith.constant 0 : i32
    %45 = arith.cmpi ne, %44, %c0_i32_17 : i32
    scf.if %45 {
      %c0_18 = arith.constant 0 : index
      %c0_19 = arith.constant 0 : index
      %46 = vector.load %arg9[%c0_18, %c0_19] : memref<8x1xf32, #tpu.memory_space<vmem>>, vector<8x1xf32>
      %cst_20 = arith.constant 0.000000e+00 : f32
      %47 = vector.broadcast %cst_20 : f32 to vector<8x1xf32>
      %48 = arith.select %21, %46, %47 : vector<8x1xi1>, vector<8x1xf32>
      %49 = vector.shape_cast %48 : vector<8x1xf32> to vector<1x8x1xf32>
      %cst_21 = arith.constant dense<0.000000e+00> : vector<1xf32>
      %50 = vector.multi_reduction <add>, %49, %cst_21 [1, 2] : vector<1x8x1xf32> to vector<1xf32>
      %51 = vector.shape_cast %50 : vector<1xf32> to vector<1x1x1xf32>
      %52 = vector.extract %51[0, 0, 0] : f32 from vector<1x1x1xf32>
      %c0_22 = arith.constant 0 : index
      %c0_23 = arith.constant 0 : index
      %53 = memref.load %arg6[%c0_22, %c0_23] : memref<1x1xf32, #tpu.memory_space<smem>>
      memref.store %52, %arg6[%c0_22, %c0_23] : memref<1x1xf32, #tpu.memory_space<smem>>
      %cst_24 = arith.constant 0.000000e+00 : f32
      %54 = vector.broadcast %cst_24 : f32 to vector<8x1xf32>
      %55 = arith.select %21, %54, %46 : vector<8x1xi1>, vector<8x1xf32>
      %56 = vector.shape_cast %55 : vector<8x1xf32> to vector<1x8x1xf32>
      %cst_25 = arith.constant dense<0.000000e+00> : vector<1xf32>
      %57 = vector.multi_reduction <add>, %56, %cst_25 [1, 2] : vector<1x8x1xf32> to vector<1xf32>
      %58 = vector.shape_cast %57 : vector<1xf32> to vector<1x1x1xf32>
      %59 = vector.extract %58[0, 0, 0] : f32 from vector<1x1x1xf32>
      %c0_26 = arith.constant 0 : index
      %c0_27 = arith.constant 0 : index
      %60 = memref.load %arg7[%c0_26, %c0_27] : memref<1x1xf32, #tpu.memory_space<smem>>
      memref.store %59, %arg7[%c0_26, %c0_27] : memref<1x1xf32, #tpu.memory_space<smem>>
    } else {
    }
    return
  }
  func.func @transform_0(%arg0: i32, %arg1: i32) -> (i32, i32) {
    %c0_i32 = arith.constant 0 : i32
    return %arg0, %arg1 : i32, i32
  }
  func.func @transform_1(%arg0: i32, %arg1: i32) -> (i32, i32) {
    %c0_i32 = arith.constant 0 : i32
    return %arg0, %arg1 : i32, i32
  }
  func.func @transform_2(%arg0: i32, %arg1: i32) -> (i32, i32) {
    %c0_i32 = arith.constant 0 : i32
    %c0_i32_0 = arith.constant 0 : i32
    %c0_i32_1 = arith.constant 0 : i32
    return %c0_i32, %c0_i32_0 : i32, i32
  }
  func.func @transform_3(%arg0: i32, %arg1: i32) -> (i32, i32) {
    %c0_i32 = arith.constant 0 : i32
    %c0_i32_0 = arith.constant 0 : i32
    %c0_i32_1 = arith.constant 0 : i32
    return %c0_i32, %c0_i32_0 : i32, i32
  }
  func.func @transform_4(%arg0: i32, %arg1: i32) -> (i32, i32) {
    %c0_i32 = arith.constant 0 : i32
    %c0_i32_0 = arith.constant 0 : i32
    return %arg0, %c0_i32 : i32, i32
  }
  func.func @transform_5(%arg0: i32, %arg1: i32) -> (i32, i32) {
    %c0_i32 = arith.constant 0 : i32
    %c0_i32_0 = arith.constant 0 : i32
    return %arg0, %c0_i32 : i32, i32
  }
  func.func @transform_6(%arg0: i32, %arg1: i32) -> (i32, i32) {
    %c0_i32 = arith.constant 0 : i32
    %c0_i32_0 = arith.constant 0 : i32
    return %arg0, %c0_i32 : i32, i32
  }
}

</mosaic_0001>

<llo_original>
// kernel: tpu_custom_call.1
$region0: #{tpu_custom_call.1}
  #allocation0 [shape = 'u32[]', space=smem, size = 0x4, offset = 0x4, fixed_abs, tag = 'smem constant byte address 0x4 - core index']
  #allocation1 [shape = 'u32[144,128]{1,0:T(1,128)}', space=vmem, size = 0x12000, scoped, tag = 'internal scratch']
  #allocation2 [shape = 'f32[8,1]{1,0:T(8,128)}', space=vmem, size = 0x1000, scoped, tag = 'scratch operand']
  %s0 = inlined_call_operand.hbm [shape: f32[8,256], index: 0, kind: input, shape index: {}]
  %s1 = inlined_call_operand.hbm [shape: f32[8,256], index: 1, kind: input, shape index: {}]
  %s2 = inlined_call_operand.vmem [shape: f32[2,32], index: 2, kind: input, shape index: {}]
  %s3 = inlined_call_operand.vmem [shape: f32[2,32], index: 3, kind: input, shape index: {}]
  %s4 = inlined_call_operand.hbm [shape: f32[1,1], index: 4, kind: output, shape index: {0}]
  %s5 = inlined_call_operand.hbm [shape: f32[1,1], index: 5, kind: output, shape index: {1}]
  %s6 = inlined_call_operand.hbm [shape: f32[1,1], index: 6, kind: output, shape index: {2}]
  %7 = xla_tuple %s4, %s5, %s6
  %s8 = sld [smem:[#allocation0]]
  $region62: #{tpu_custom_call.1} parent=0
    _
  %s10 = ssub.s32 1, %s8
  %s11 = scalar_select 0, %s10, %s8
  $region1: #{tpu_custom_call.1} parent=0
    #allocation3 [shape = 'u8[8192]{0}', space=vmem, size = 0x2000, scoped, tag = 'input window, operand 0, single buffered']
    #allocation4 [shape = 's32[1]{0}', space=sflag, size = 0x4, scoped, tag = 'scoped memory for tpu_custom_call.1']
    #allocation5 [shape = 's32[1]{0}', space=sflag, size = 0x4, scoped, tag = 'scoped memory for tpu_custom_call.1']
    #allocation6 [shape = 'u8[8192]{0}', space=vmem, size = 0x2000, scoped, tag = 'input window, operand 1, single buffered']
    #allocation7 [shape = 's32[1]{0}', space=sflag, size = 0x4, scoped, tag = 'scoped memory for tpu_custom_call.1']
    #allocation8 [shape = 'u8[512]{0}', space=smem, size = 0x200, scoped, tag = 'output window, operand 0, single buffered']
    #allocation9 [shape = 'u8[512]{0}', space=smem, size = 0x200, scoped, tag = 'output window, operand 1, single buffered']
    #allocation10 [shape = 's32[1]{0}', space=sflag, size = 0x4, scoped, tag = 'scoped memory for tpu_custom_call.1']
    #allocation11 [shape = 'u8[512]{0}', space=smem, size = 0x200, scoped, tag = 'output window, operand 2, single buffered']
    %12 = vsyncpa [#allocation4], 0
    %13 = vsyncpa [#allocation7], 0
    %14 = vsyncpa [#allocation5], 0
    %15 = vsyncpa [#allocation10], 0
    // Predicated region
    $region2: #{tpu_custom_call.1} parent=1 // pred_check
      _
    $region3: #{tpu_custom_call.1} parent=1 // pred_check_branch
      %17 = sbr.rel (0) target = $region5
    $region4: #{tpu_custom_call.1} parent=1 // pred_region
      %s19 = ssub.s32 256, 256
      %20 = vsyncadd [#allocation4], %s19
      %s22 = sshll.u32 [#allocation3], 4
      %s23 = int_to_ptr.vmem [resolvable:$true] %s22
      %25 = dma.hbm_to_vmem [thread:$0]  %s0, 256, %s23, [#allocation4]
    $region5: #{tpu_custom_call.1} parent=1 // pred_fallthru
      _
    // Predicated region
    $region6: #{tpu_custom_call.1} parent=1 // pred_check
      _
    $region7: #{tpu_custom_call.1} parent=1 // pred_check_branch
      %27 = sbr.rel (0) target = $region9
    $region8: #{tpu_custom_call.1} parent=1 // pred_region
      %s29 = ssub.s32 256, 256
      %30 = vsyncadd [#allocation7], %s29
      %s32 = sshll.u32 [#allocation6], 4
      %s33 = int_to_ptr.vmem [resolvable:$true] %s32
      %35 = dma.hbm_to_vmem [thread:$0]  %s1, 256, %s33, [#allocation7]
    $region9: #{tpu_custom_call.1} parent=1 // pred_fallthru
      _
    // Predicated region
    $region10: #{tpu_custom_call.1} parent=1 // pred_check
      _
    $region11: #{tpu_custom_call.1} parent=1 // pred_check_branch
      %37 = sbr.rel (0) target = $region13
    $region12: #{tpu_custom_call.1} parent=1 // pred_region
      _
    $region13: #{tpu_custom_call.1} parent=1 // pred_fallthru
      _
    // Predicated region
    $region14: #{tpu_custom_call.1} parent=1 // pred_check
      _
    $region15: #{tpu_custom_call.1} parent=1 // pred_check_branch
      %39 = sbr.rel (0) target = $region17
    $region16: #{tpu_custom_call.1} parent=1 // pred_region
      _
    $region17: #{tpu_custom_call.1} parent=1 // pred_fallthru
      _
    // Predicated region
    $region18: #{tpu_custom_call.1} parent=1 // pred_check
      _
    $region19: #{tpu_custom_call.1} parent=1 // pred_check_branch
      %41 = sbr.rel (0) target = $region21
    $region20: #{tpu_custom_call.1} parent=1 // pred_region
      %42 = dma.done [#allocation4], 256
    $region21: #{tpu_custom_call.1} parent=1 // pred_fallthru
      _
    // Predicated region
    $region22: #{tpu_custom_call.1} parent=1 // pred_check
      _
    $region23: #{tpu_custom_call.1} parent=1 // pred_check_branch
      %44 = sbr.rel (0) target = $region25
    $region24: #{tpu_custom_call.1} parent=1 // pred_region
      %45 = dma.done [#allocation7], 256
    $region25: #{tpu_custom_call.1} parent=1 // pred_fallthru
      _
    %v46 = vlaneseq
    %v47 = vshrl.u32 %v46, 7
    %s48 = smul.u32 0, 8
    %v49 = vstv %s48
    %v50 = vadd.s32 %v47, %v49
    %vm51 = vcmp.lt.s32.totalorder %v50, 0
    %v52 = vsub.s32 0, %v50
    %v53 = vsel %vm51, %v52, %v50
    %v54 = vshrl.u32 %v53, 2
    %v55 = vand.u32 %v53, 3
    %v56 = vsub.s32 0, %v55
    %v57 = vsel %vm51, %v56, %v55
    %vm58 = vcmp.ne.s32.totalorder %v57, 0
    %vm59 = vcmp.lt.s32.totalorder %v57, 0
    %vm60 = vmand %vm59, %vm58
    %v61 = vadd.s32 %v57, 4
    %v62 = vsel %vm60, %v61, %v57
    %vm63 = vcmp.eq.s32.totalorder %v62, 0
    %p64 = scmp.eq.s32.totalorder 0, 0
    // Predicated region
    $region26: #{tpu_custom_call.1} parent=1 // pred_check
      %p65 = pneg %p64
    $region27: #{tpu_custom_call.1} parent=1 // pred_check_branch
      %67 = sbr.rel (%p65) target = $region29
    $region28: #{tpu_custom_call.1} parent=1 // pred_region
      %vm68 = vcmask 7168
      %69 = vst.msk [vmem:[#allocation2] sm:$0xff] %vm68, 0.0
    $region29: #{tpu_custom_call.1} parent=1 // pred_fallthru
      _
    %v70 = vld [vmem:[#allocation3] sm:$0xff]
    %v71 = vld [vmem:[#allocation3 + $0x8] sm:$0xff]
    %v72 = vld [vmem:[#allocation6] sm:$0xff]
    %v73 = vld [vmem:[#allocation6 + $0x8] sm:$0xff]
    %v74 = vsub.f32 %v70, %v72
    %v75 = vsub.f32 %v71, %v73
    %v76 = vand.u32 2147483647, %v74
    %v77 = vand.u32 2147483647, %v75
    %v78 = vmul.f32 %v76, %v76
    %v79 = vmul.f32 %v77, %v77
    %v80 = vsel %vm63, 1, 0
    %vm81 = vcmp.eq.s32.totalorder %v80, 1
    %v82 = vsel %vm81, %v78, %v76
    %v83 = vsel %vm81, %v79, %v77
    %v84 = vld [vmem:[#allocation2] sm:$0xff]
    %v85 = vadd.f32 %v82, %v83
    %86 = vadd.xlane.f32.xlu0 %v85
    %v87 = vpop.xlane.xlu0 %86
    %v88 = vadd.f32 %v84, %v87
    %vm89 = vcmask 7168
    %90 = vst.msk [vmem:[#allocation2] sm:$0xff] %vm89, %v88
    %p91 = scmp.eq.s32.totalorder 0, 0
    %p92 = pnand %p91, %p64
    %p93 = pneg %p92
    // Predicated region
    $region30: #{tpu_custom_call.1} parent=1 // pred_check
      _
    $region31: #{tpu_custom_call.1} parent=1 // pred_check_branch
      %95 = sbr.rel (%p92) target = $region33
    $region32: #{tpu_custom_call.1} parent=1 // pred_region
      %v96 = vld [vmem:[%s2] sm:$0x3]
      %v97 = vld [vmem:[%s3] sm:$0x3]
      %v98 = vadd.f32 %v97, 1.0
      %v99 = vmul.f32 %v96, %v96
      %v100 = vsub.f32 %v98, %v99
      %v101 = vmul.f32 %v97, 1.442695
      %v102 = vpow.pop %v101
      %v103 = vsub.f32 %v100, %v102
      %vm104 = vcmask 254976
      %v105 = vsel %vm104, %v103, 0.0
      %106 = vadd.xlane.f32.xlu0 %v105
      %v107 = vpop.xlane.xlu0 %106
      %v108 = vrot.slane %v107, 4
      %v109 = vadd.f32 %v107, %v108
      %v110 = vrot.slane %v109, 2
      %v111 = vadd.f32 %v109, %v110
      %v112 = vrot.slane %v111, 1
      %v113 = vadd.f32 %v111, %v112
      %s114 = vtos %v113
      %s115 = smul.f32 %s114, -0.5
      %s116 = scalar_lea.smem [#allocation11], 0
      %117 = sst [smem:[%s116]] %s115
    $region33: #{tpu_custom_call.1} parent=1 // pred_fallthru
      _
    // Predicated region
    $region34: #{tpu_custom_call.1} parent=1 // pred_check
      %p118 = pneg %p64
    $region35: #{tpu_custom_call.1} parent=1 // pred_check_branch
      %120 = sbr.rel (%p118) target = $region37
    $region36: #{tpu_custom_call.1} parent=1 // pred_region
      %v121 = vld [vmem:[#allocation2] sm:$0xff]
      %v122 = vsel %vm63, %v121, 0.0
      %v123 = vsel %vm89, %v122, 0.0
      %124 = vadd.xlane.f32.xlu0 %v123
      %v125 = vpop.xlane.xlu0 %124
      %v126 = vrot.slane %v125, 4
      %v127 = vadd.f32 %v125, %v126
      %v128 = vrot.slane %v127, 2
      %v129 = vadd.f32 %v127, %v128
      %v130 = vrot.slane %v129, 1
      %v131 = vadd.f32 %v129, %v130
      %s132 = vtos %v131
      %s133 = scalar_lea.smem [#allocation8], 0
      %134 = sst [smem:[%s133]] %s132
      %v135 = vsel %vm63, 0.0, %v121
      %v136 = vsel %vm89, %v135, 0.0
      %137 = vadd.xlane.f32.xlu0 %v136
      %v138 = vpop.xlane.xlu0 %137
      %v139 = vrot.slane %v138, 4
      %v140 = vadd.f32 %v138, %v139
      %v141 = vrot.slane %v140, 2
      %v142 = vadd.f32 %v140, %v141
      %v143 = vrot.slane %v142, 1
      %v144 = vadd.f32 %v142, %v143
      %s145 = vtos %v144
      %s146 = scalar_lea.smem [#allocation9], 0
      %147 = sst [smem:[%s146]] %s145
    $region37: #{tpu_custom_call.1} parent=1 // pred_fallthru
      _
    // Predicated region
    $region38: #{tpu_custom_call.1} parent=1 // pred_check
      _
    $region39: #{tpu_custom_call.1} parent=1 // pred_check_branch
      %149 = sbr.rel (0) target = $region41
    $region40: #{tpu_custom_call.1} parent=1 // pred_region
      %s151 = ssub.s32 16, 16
      %152 = vsyncadd [#allocation5], %s151
      %155 = dma.smem_to_hbm [#allocation8], 16, %s4, [#allocation5]
    $region41: #{tpu_custom_call.1} parent=1 // pred_fallthru
      _
    // Predicated region
    $region42: #{tpu_custom_call.1} parent=1 // pred_check
      _
    $region43: #{tpu_custom_call.1} parent=1 // pred_check_branch
      %157 = sbr.rel (0) target = $region45
    $region44: #{tpu_custom_call.1} parent=1 // pred_region
      %s159 = ssub.s32 16, 16
      %160 = vsyncadd [#allocation10], %s159
      %163 = dma.smem_to_hbm [#allocation9], 16, %s5, [#allocation10]
    $region45: #{tpu_custom_call.1} parent=1 // pred_fallthru
      _
    // Predicated region
    $region46: #{tpu_custom_call.1} parent=1 // pred_check
      _
    $region47: #{tpu_custom_call.1} parent=1 // pred_check_branch
      %165 = sbr.rel (0) target = $region49
    $region48: #{tpu_custom_call.1} parent=1 // pred_region
      %s167 = ssub.s32 16, 16
      %168 = vsyncadd [#allocation10], %s167
      %171 = dma.smem_to_hbm [#allocation11], 16, %s6, [#allocation10]
    $region49: #{tpu_custom_call.1} parent=1 // pred_fallthru
      _
    // Predicated region
    $region50: #{tpu_custom_call.1} parent=1 // pred_check
      _
    $region51: #{tpu_custom_call.1} parent=1 // pred_check_branch
      %173 = sbr.rel (0) target = $region53
    $region52: #{tpu_custom_call.1} parent=1 // pred_region
      %174 = dma.done [#allocation5], 16
    $region53: #{tpu_custom_call.1} parent=1 // pred_fallthru
      _
    // Predicated region
    $region54: #{tpu_custom_call.1} parent=1 // pred_check
      _
    $region55: #{tpu_custom_call.1} parent=1 // pred_check_branch
      %176 = sbr.rel (0) target = $region57
    $region56: #{tpu_custom_call.1} parent=1 // pred_region
      %177 = dma.done [#allocation10], 16
    $region57: #{tpu_custom_call.1} parent=1 // pred_fallthru
      _
    // Predicated region
    $region58: #{tpu_custom_call.1} parent=1 // pred_check
      _
    $region59: #{tpu_custom_call.1} parent=1 // pred_check_branch
      %179 = sbr.rel (0) target = $region61
    $region60: #{tpu_custom_call.1} parent=1 // pred_region
      %180 = dma.done [#allocation10], 16
    $region61: #{tpu_custom_call.1} parent=1 // pred_fallthru
      _
    %181 = sfence
    %182 = vsyncpa [#allocation4], 1
    %183 = vsyncpa [#allocation7], 1
    %184 = vsyncpa [#allocation5], 1
    %185 = vsyncpa [#allocation10], 1

</llo_original>
